<compile_context>
chip_gen: v7x
topology: tpu7x:2x2x1
jax: 0.10.0
libtpu: 0.0.40
codegen_flags: <defaults>
</compile_context>

<pallas_src>
import functools

import jax
import jax.numpy as jnp
from jax.experimental import pallas as pl
from jax.experimental.pallas import tpu as pltpu


def _round_up(x, m):
    return ((x + m - 1) // m) * m


def _choose_blocking(batch):
    """Return (padded_batch, block_b).

    >= 2 grid steps for any batch > 64 so both v7x TensorCores get work via
    dimension_semantics=("parallel",); 2048-row blocks for large batches to
    amortize the per-grid-step overhead.  v5e/v6e (1 TC) are unaffected.
    """
    b8 = _round_up(max(batch, 1), 8)
    if b8 <= 64:                                   # tiny: one sublane-aligned block
        return b8, b8
    if b8 <= 4096:                                 # mid: exactly two steps
        block_b = _round_up((b8 + 1) // 2, 8)
        return 2 * block_b, block_b
    block_b = 2048                                 # large: 2048-row blocks
    return _round_up(b8, block_b), block_b


# ----------------------------------------------------------------------------
# Pallas kernel: n_heads x (Linear -> LeakyReLU -> Linear -> LeakyReLU -> Linear)
# All parameters of all heads live in a single packed, zero-padded bf16 slab:
#   rows [0 : kx/hid_pad]  -> weights (w1 may be row-offset per head so it picks
#                             the right sub-range of the shared code vector)
#   row  [bias_row]        -> biases
#   per-head column blocks: [w1 | w2 | w3] of widths hid_pad, hid_pad, out_pad.
# Zero padding guarantees padded lanes stay exactly 0 through every layer.
# ----------------------------------------------------------------------------
def _landmark_mlp_kernel(x_ref, p_ref, o_ref, *, n_heads, kx, hid_pad, out_pad,
                         bias_row, head_cols):
    neg_slope = jnp.float32(0.01)
    # Narrow-K activations straight from HBM; cast once to the MXU-native bf16.
    x = x_ref[...].astype(jnp.bfloat16)                       # (BB, kx)

    for hd in range(n_heads):                                 # static unroll (<= 2)
        c0 = hd * head_cols
        c1 = c0 + hid_pad
        c2 = c0 + 2 * hid_pad

        w1 = p_ref[0:kx, c0:c0 + hid_pad]                     # (kx, hid_pad) bf16
        b1 = p_ref[bias_row:bias_row + 1, c0:c0 + hid_pad].astype(jnp.float32)
        h = jnp.dot(x, w1, preferred_element_type=jnp.float32) + b1
        h = jnp.maximum(h, neg_slope * h)                     # LeakyReLU(0.01), f32

        w2 = p_ref[0:hid_pad, c1:c1 + hid_pad]
        b2 = p_ref[bias_row:bias_row + 1, c1:c1 + hid_pad].astype(jnp.float32)
        h = jnp.dot(h.astype(jnp.bfloat16), w2,
                    preferred_element_type=jnp.float32) + b2
        h = jnp.maximum(h, neg_slope * h)

        w3 = p_ref[0:hid_pad, c2:c2 + out_pad]
        b3 = p_ref[bias_row:bias_row + 1, c2:c2 + out_pad].astype(jnp.float32)
        out = jnp.dot(h.astype(jnp.bfloat16), w3,
                      preferred_element_type=jnp.float32) + b3

        # Lane-dense store: out_pad and the head offset are multiples of 128.
        o_ref[:, hd * out_pad:(hd + 1) * out_pad] = out


def _run_landmark_mlp(x, param_slab, *, n_heads, hid_pad, out_pad, bias_row,
                      head_cols, block_b):
    """x: (BP, kx) f32 with BP % block_b == 0 (kx = raw code width, unpadded).
    param_slab: (R, n_heads*head_cols) bf16, resident across the whole grid."""
    BP, kx = x.shape
    R, C = param_slab.shape

    kernel = functools.partial(
        _landmark_mlp_kernel, n_heads=n_heads, kx=kx, hid_pad=hid_pad,
        out_pad=out_pad, bias_row=bias_row, head_cols=head_cols)

    return pl.pallas_call(
        kernel,
        out_shape=jax.ShapeDtypeStruct((BP, n_heads * out_pad), jnp.float32),
        grid=(BP // block_b,),
        in_specs=[
            pl.BlockSpec((block_b, kx), lambda i: (i, 0)),    # narrow codes stream
            pl.BlockSpec((R, C), lambda i: (0, 0)),           # bf16 weights resident
        ],
        out_specs=pl.BlockSpec((block_b, n_heads * out_pad), lambda i: (i, 0)),
        compiler_params=pltpu.CompilerParams(
            dimension_semantics=("parallel",)),
    )(x, param_slab)


# ----------------------------------------------------------------------------
# LandmarkNets module (parameters initialized deterministically in-script)
# ----------------------------------------------------------------------------
class LandmarkNets:
    DEFAULT_SPARSE_INDEX = (36, 45, 30, 48, 54)

    def __init__(self, exp_dim, id_dim, hidden_feature, kpt_num, template_kpts,
                 sparse_index=DEFAULT_SPARSE_INDEX, *, key):
        self.exp_dim = exp_dim
        self.id_dim = id_dim
        self.hidden = hidden_feature
        self.kpt_num = kpt_num
        self.out_dim = 3 * kpt_num
        self.sparse_index = jnp.asarray(sparse_index, dtype=jnp.int32)
        self.template_kpts = template_kpts                     # (kpt_num, 3)

        # Padded geometry (lane-dense 128 multiples for hidden/output columns;
        # the K padding of the first layer is gone — codes stream unpadded).
        self.hid_pad = _round_up(hidden_feature, 128)
        self.out_pad = _round_up(self.out_dim, 128)
        self.bias_row = _round_up(max(exp_dim + id_dim, self.hid_pad), 8)
        self.slab_rows = self.bias_row + 8
        self.head_cols = 2 * self.hid_pad + self.out_pad

        def lin(kw, kb, di, do):
            # deterministic ~ PyTorch-style uniform(-1/sqrt(di), 1/sqrt(di))
            bound = float(di) ** -0.5
            w = jax.random.uniform(kw, (di, do), jnp.float32, -bound, bound)
            b = jax.random.uniform(kb, (do,), jnp.float32, -bound, bound)
            return w, b

        def make_mlp(k, in_dim):
            ks = jax.random.split(k, 6)
            w1, b1 = lin(ks[0], ks[1], in_dim, hidden_feature)
            w2, b2 = lin(ks[2], ks[3], hidden_feature, hidden_feature)
            w3, b3 = lin(ks[4], ks[5], hidden_feature, self.out_dim)
            return dict(w1=w1, b1=b1, w2=w2, b2=b2, w3=w3, b3=b3)

        k_exp, k_id = jax.random.split(key)
        self.exp_params = make_mlp(k_exp, id_dim + exp_dim)
        self.id_params = make_mlp(k_id, id_dim)

        # Pre-packed bf16 parameter slabs (built once; one DMA per pallas_call).
        #  - exp head (and id-solo head) place w1 at row 0 of the slab.
        #  - in the fused slab the id head's w1 is row-offset by exp_dim so it
        #    picks out x[:, exp_dim:exp_dim+id_dim] of the shared code vector.
        self.exp_slab = self._pack_head(self.exp_params, w1_row_offset=0)
        self.id_slab = self._pack_head(self.id_params, w1_row_offset=0)
        self.both_slab = jnp.concatenate(
            [self.exp_slab,
             self._pack_head(self.id_params, w1_row_offset=exp_dim)], axis=1)

    # --- parameter packing ---------------------------------------------------
    def _pack_head(self, p, w1_row_offset):
        H, out = self.hidden, self.out_dim
        hp = self.hid_pad
        slab = jnp.zeros((self.slab_rows, self.head_cols), jnp.float32)
        w1 = p["w1"]
        slab = slab.at[w1_row_offset:w1_row_offset + w1.shape[0], 0:H].set(w1)
        slab = slab.at[0:H, hp:hp + H].set(p["w2"])
        slab = slab.at[0:H, 2 * hp:2 * hp + out].set(p["w3"])
        slab = slab.at[self.bias_row, 0:H].set(p["b1"])
        slab = slab.at[self.bias_row, hp:hp + H].set(p["b2"])
        slab = slab.at[self.bias_row, 2 * hp:2 * hp + out].set(p["b3"])
        return slab.astype(jnp.bfloat16)          # bf16 storage, f32 accumulation

    # --- input prep: no lane padding; only cheap row pad to the batch block ----
    def _prep_codes(self, code):
        B = code.shape[0]
        BP, block_b = _choose_blocking(B)
        x = code.astype(jnp.float32)
        if BP > B:
            x = jnp.concatenate(
                [x, jnp.zeros((BP - B, x.shape[1]), jnp.float32)], axis=0)
        return x, B, block_b

    def _call_mlp(self, x, param_slab, n_heads, block_b):
        return _run_landmark_mlp(
            x, param_slab, n_heads=n_heads, hid_pad=self.hid_pad,
            out_pad=self.out_pad, bias_row=self.bias_row,
            head_cols=self.head_cols, block_b=block_b)

    # --- buffer accessors (pure glue, plain JAX) -------------------------------
    def get_template_kpts(self, sparse=False):
        if sparse:
            return self.template_kpts[self.sparse_index, :]
        return self.template_kpts

    @property
    def get_sparse_index(self):
        return self.sparse_index

    def get_sparse_landmark(self, landmark):
        return landmark[:, self.sparse_index, :]

    # --- landmark heads (Pallas kernel hot path) --------------------------------
    def get_exp_landmark(self, exp_code, id_code):
        code = jnp.concatenate((exp_code, id_code), axis=-1)
        x, B, block_b = self._prep_codes(code)
        out = self._call_mlp(x, self.exp_slab, 1, block_b)
        return out[:B, :self.out_dim].reshape(-1, self.kpt_num, 3)

    def get_id_landmark(self, id_code):
        x, B, block_b = self._prep_codes(id_code)
        out = self._call_mlp(x, self.id_slab, 1, block_b)
        return out[:B, :self.out_dim].reshape(-1, self.kpt_num, 3)

    def get_landmarks(self, exp_code, id_code):
        """Fused path: both heads in a single pallas_call (use when both needed)."""
        code = jnp.concatenate((exp_code, id_code), axis=-1)
        x, B, block_b = self._prep_codes(code)
        out = self._call_mlp(x, self.both_slab, 2, block_b)
        exp_lm = out[:B, :self.out_dim].reshape(-1, self.kpt_num, 3)
        id_lm = out[:B, self.out_pad:self.out_pad + self.out_dim].reshape(
            -1, self.kpt_num, 3)
        return exp_lm, id_lm

    def forward(self, **kwargs):
        # Matches the PyTorch module: forward is not implemented.
        raise NotImplementedError


# ----------------------------------------------------------------------------
# Pure-JAX references (for correctness checks against the Pallas kernel)
# ----------------------------------------------------------------------------
def _mlp_ref_f32(x, p):
    def lrelu(h):
        return jnp.where(h > 0, h, 0.01 * h)
    h = lrelu(x @ p["w1"] + p["b1"])
    h = lrelu(h @ p["w2"] + p["b2"])
    return h @ p["w3"] + p["b3"]


def _mlp_ref_bf16(x, p):
    """Same mixed precision as the kernel: bf16 operands, f32 accumulation."""
    def lrelu(h):
        return jnp.where(h > 0, h, 0.01 * h)
    bf = lambda a: a.astype(jnp.bfloat16)
    f32 = jnp.float32
    h = jnp.dot(bf(x), bf(p["w1"]), preferred_element_type=f32) \
        + bf(p["b1"]).astype(f32)
    h = lrelu(h)
    h = jnp.dot(bf(h), bf(p["w2"]), preferred_element_type=f32) \
        + bf(p["b2"]).astype(f32)
    h = lrelu(h)
    return jnp.dot(bf(h), bf(p["w3"]), preferred_element_type=f32) \
        + bf(p["b3"]).astype(f32)


if __name__ == "__main__":
    key = jax.random.PRNGKey(0)
    k_params, k_exp, k_id, k_tpl, k_big = jax.random.split(key, 5)

    # Small shapes consistent with the module.
    B = 2
    exp_dim = 8
    id_dim = 8
    hidden_feature = 32
    kpt_num = 68  # sparse_index goes up to 54, so kpt_num >= 55

    template_kpts = jax.random.normal(k_tpl, (kpt_num, 3), jnp.float32)

    net = LandmarkNets(exp_dim, id_dim, hidden_feature, kpt_num,
                       template_kpts, key=k_params)

    exp_code = jax.random.normal(k_exp, (B, exp_dim), jnp.float32)
    id_code = jax.random.normal(k_id, (B, id_dim), jnp.float32)

    # Individual heads (module API) + fused path (one pallas_call for both).
    exp_lm = net.get_exp_landmark(exp_code, id_code)     # (B, kpt_num, 3)
    id_lm = net.get_id_landmark(id_code)                 # (B, kpt_num, 3)
    exp_lm_f, id_lm_f = net.get_landmarks(exp_code, id_code)
    sparse_lm = net.get_sparse_landmark(exp_lm)          # (B, 5, 3)
    tpl_sparse = net.get_template_kpts(sparse=True)      # (5, 3)
    jax.block_until_ready((exp_lm, id_lm, exp_lm_f, id_lm_f, sparse_lm, tpl_sparse))

    # References.
    code = jnp.concatenate((exp_code, id_code), axis=-1)
    exp_ref_bf = _mlp_ref_bf16(code, net.exp_params).reshape(-1, kpt_num, 3)
    id_ref_bf = _mlp_ref_bf16(id_code, net.id_params).reshape(-1, kpt_num, 3)
    exp_ref_f32 = _mlp_ref_f32(code, net.exp_params).reshape(-1, kpt_num, 3)
    id_ref_f32 = _mlp_ref_f32(id_code, net.id_params).reshape(-1, kpt_num, 3)

    assert exp_lm.shape == (B, kpt_num, 3)
    assert id_lm.shape == (B, kpt_num, 3)
    assert sparse_lm.shape == (B, 5, 3)
    assert tpl_sparse.shape == (5, 3)

    # Kernel matches the mixed-precision (bf16 weights / f32 accum) reference …
    assert jnp.allclose(exp_lm, exp_ref_bf, atol=5e-3, rtol=5e-3)
    assert jnp.allclose(id_lm, id_ref_bf, atol=5e-3, rtol=5e-3)
    assert jnp.allclose(exp_lm_f, exp_ref_bf, atol=5e-3, rtol=5e-3)
    assert jnp.allclose(id_lm_f, id_ref_bf, atol=5e-3, rtol=5e-3)
    # … and stays close to the original pure-f32 module semantics.
    assert jnp.allclose(exp_lm, exp_ref_f32, atol=3e-2, rtol=3e-2)
    assert jnp.allclose(id_lm, id_ref_f32, atol=3e-2, rtol=3e-2)

    # Exercise the >=2-grid-step path (v7x dual-TC blocking, row-padded batch).
    B2 = 72
    exp2 = jax.random.normal(k_big, (B2, exp_dim), jnp.float32)
    id2 = jax.random.normal(jax.random.fold_in(k_big, 1), (B2, id_dim), jnp.float32)
    exp_lm2, id_lm2 = net.get_landmarks(exp2, id2)
    jax.block_until_ready((exp_lm2, id_lm2))
    code2 = jnp.concatenate((exp2, id2), axis=-1)
    assert jnp.allclose(
        exp_lm2, _mlp_ref_bf16(code2, net.exp_params).reshape(-1, kpt_num, 3),
        atol=5e-3, rtol=5e-3)
    assert jnp.allclose(
        id_lm2, _mlp_ref_bf16(id2, net.id_params).reshape(-1, kpt_num, 3),
        atol=5e-3, rtol=5e-3)

    print("KERNEL_OK")
</pallas_src>

<mosaic_0001>
module attributes {stable_mosaic.version = 11 : i64} {
  func.func @_landmark_mlp_kernel(%arg0: i32, %arg1: memref<8x16xf32, #tpu.memory_space<vmem>>, %arg2: memref<136x512xbf16, #tpu.memory_space<vmem>>, %arg3: memref<8x256xf32, #tpu.memory_space<vmem>>) attributes {dimension_semantics = [#tpu.dimension_semantics<parallel>], iteration_bounds = array<i64: 1>, scalar_prefetch = 0 : i64, scratch_operands = 0 : i64, tpu.core_type = #tpu.core_type<tc>, window_params = [{transform_indices = @transform_0, window_bounds = array<i64: 8, 16>}, {pipeline_mode = #tpu.pipeline_mode<synchronous>, transform_indices = @transform_1, window_bounds = array<i64: 136, 512>}, {transform_indices = @transform_2, window_bounds = array<i64: 8, 256>}]} {
    %c0 = arith.constant 0 : index
    %c0_0 = arith.constant 0 : index
    %0 = vector.load %arg1[%c0, %c0_0] : memref<8x16xf32, #tpu.memory_space<vmem>>, vector<8x16xf32>
    %1 = arith.truncf %0 : vector<8x16xf32> to vector<8x16xbf16>
    %c0_1 = arith.constant 0 : index
    %c0_2 = arith.constant 0 : index
    %2 = vector.load %arg2[%c0_1, %c0_2] : memref<136x512xbf16, #tpu.memory_space<vmem>>, vector<16x128xbf16>
    %c128 = arith.constant 128 : index
    %c0_3 = arith.constant 0 : index
    %3 = vector.load %arg2[%c128, %c0_3] : memref<136x512xbf16, #tpu.memory_space<vmem>>, vector<1x128xbf16>
    %4 = arith.extf %3 : vector<1x128xbf16> to vector<1x128xf32>
    %cst = arith.constant dense<0.000000e+00> : vector<8x128xf32>
    %5 = tpu.matmul %1, %2, %cst {dimension_numbers = #tpu.dot_dimension_numbers<[1], [0], [0], [1], [0, 0, 1, 1], [], []>} : vector<8x16xbf16>, vector<16x128xbf16>, vector<8x128xf32> -> vector<8x128xf32>
    %6 = vector.broadcast %4 : vector<1x128xf32> to vector<8x128xf32>
    %7 = arith.addf %5, %6 : vector<8x128xf32>
    %cst_4 = arith.constant 0.00999999977 : f32
    %8 = vector.broadcast %cst_4 : f32 to vector<8x128xf32>
    %9 = arith.mulf %8, %7 : vector<8x128xf32>
    %10 = arith.maximumf %7, %9 : vector<8x128xf32>
    %c0_5 = arith.constant 0 : index
    %c128_6 = arith.constant 128 : index
    %11 = vector.load %arg2[%c0_5, %c128_6] : memref<136x512xbf16, #tpu.memory_space<vmem>>, vector<128x128xbf16>
    %c128_7 = arith.constant 128 : index
    %c128_8 = arith.constant 128 : index
    %12 = vector.load %arg2[%c128_7, %c128_8] : memref<136x512xbf16, #tpu.memory_space<vmem>>, vector<1x128xbf16>
    %13 = arith.extf %12 : vector<1x128xbf16> to vector<1x128xf32>
    %14 = arith.truncf %10 : vector<8x128xf32> to vector<8x128xbf16>
    %cst_9 = arith.constant dense<0.000000e+00> : vector<8x128xf32>
    %15 = tpu.matmul %14, %11, %cst_9 {dimension_numbers = #tpu.dot_dimension_numbers<[1], [0], [0], [1], [0, 0, 1, 1], [], []>} : vector<8x128xbf16>, vector<128x128xbf16>, vector<8x128xf32> -> vector<8x128xf32>
    %16 = vector.broadcast %13 : vector<1x128xf32> to vector<8x128xf32>
    %17 = arith.addf %15, %16 : vector<8x128xf32>
    %cst_10 = arith.constant 0.00999999977 : f32
    %18 = vector.broadcast %cst_10 : f32 to vector<8x128xf32>
    %19 = arith.mulf %18, %17 : vector<8x128xf32>
    %20 = arith.maximumf %17, %19 : vector<8x128xf32>
    %c0_11 = arith.constant 0 : index
    %c256 = arith.constant 256 : index
    %21 = vector.load %arg2[%c0_11, %c256] : memref<136x512xbf16, #tpu.memory_space<vmem>>, vector<128x256xbf16>
    %c128_12 = arith.constant 128 : index
    %c256_13 = arith.constant 256 : index
    %22 = vector.load %arg2[%c128_12, %c256_13] : memref<136x512xbf16, #tpu.memory_space<vmem>>, vector<1x256xbf16>
    %23 = arith.extf %22 : vector<1x256xbf16> to vector<1x256xf32>
    %24 = arith.truncf %20 : vector<8x128xf32> to vector<8x128xbf16>
    %cst_14 = arith.constant dense<0.000000e+00> : vector<8x256xf32>
    %25 = tpu.matmul %24, %21, %cst_14 {dimension_numbers = #tpu.dot_dimension_numbers<[1], [0], [0], [1], [0, 0, 1, 1], [], []>} : vector<8x128xbf16>, vector<128x256xbf16>, vector<8x256xf32> -> vector<8x256xf32>
    %26 = vector.broadcast %23 : vector<1x256xf32> to vector<8x256xf32>
    %27 = arith.addf %25, %26 : vector<8x256xf32>
    %c0_15 = arith.constant 0 : index
    %c0_16 = arith.constant 0 : index
    %28 = vector.load %arg3[%c0_15, %c0_16] : memref<8x256xf32, #tpu.memory_space<vmem>>, vector<8x256xf32>
    tpu.vector_store %arg3[%c0_15, %c0_16], %27 {strides = array<i32>} : memref<8x256xf32, #tpu.memory_space<vmem>>, vector<8x256xf32>,
    return
  }
  func.func @transform_0(%arg0: i32) -> (i32, i32) {
    %c0_i32 = arith.constant 0 : i32
    %c0_i32_0 = arith.constant 0 : i32
    return %arg0, %c0_i32 : i32, i32
  }
  func.func @transform_1(%arg0: i32) -> (i32, i32) {
    %c0_i32 = arith.constant 0 : i32
    %c0_i32_0 = arith.constant 0 : i32
    %c0_i32_1 = arith.constant 0 : i32
    return %c0_i32, %c0_i32_0 : i32, i32
  }
  func.func @transform_2(%arg0: i32) -> (i32, i32) {
    %c0_i32 = arith.constant 0 : i32
    %c0_i32_0 = arith.constant 0 : i32
    return %arg0, %c0_i32 : i32, i32
  }
}

</mosaic_0001>

<llo_original>
// kernel: tpu_custom_call.1
$region0: #{tpu_custom_call.1}
  #allocation0 [shape = 'u32[]', space=smem, size = 0x4, offset = 0x4, fixed_abs, tag = 'smem constant byte address 0x4 - core index']
  #allocation1 [shape = 'u32[144,128]{1,0:T(1,128)}', space=vmem, size = 0x12000, scoped, tag = 'internal scratch']
  %s0 = inlined_call_operand.hbm [shape: f32[8,16], index: 0, kind: input, shape index: {}]
  %s1 = inlined_call_operand.hbm [shape: bf16[136,512], index: 1, kind: input, shape index: {}]
  %s2 = inlined_call_operand.hbm [shape: f32[8,256], index: 2, kind: output, shape index: {}]
  %s3 = sld [smem:[#allocation0]]
  $region26: #{tpu_custom_call.1} parent=0
    _
  %s5 = ssub.s32 1, %s3
  %s6 = scalar_select 0, %s5, %s3
  $region1: #{tpu_custom_call.1} parent=0
    #allocation2 [shape = 'u8[4096]{0}', space=vmem, size = 0x1000, scoped, tag = 'input window, operand 0, single buffered']
    #allocation3 [shape = 's32[1]{0}', space=sflag, size = 0x4, scoped, tag = 'scoped memory for tpu_custom_call.1']
    #allocation4 [shape = 's32[1]{0}', space=sflag, size = 0x4, scoped, tag = 'scoped memory for tpu_custom_call.1']
    #allocation5 [shape = 'u8[139264]{0}', space=vmem, size = 0x22000, scoped, tag = 'input window, operand 1, single buffered']
    #allocation6 [shape = 's32[1]{0}', space=sflag, size = 0x4, scoped, tag = 'scoped memory for tpu_custom_call.1']
    #allocation7 [shape = 'u8[8192]{0}', space=vmem, size = 0x2000, scoped, tag = 'output window, operand 0, single buffered']
    %7 = vsyncpa [#allocation3], 0
    %8 = vsyncpa [#allocation6], 0
    %9 = vsyncpa [#allocation4], 0
    // Predicated region
    $region2: #{tpu_custom_call.1} parent=1 // pred_check
      _
    $region3: #{tpu_custom_call.1} parent=1 // pred_check_branch
      %11 = sbr.rel (0) target = $region5
    $region4: #{tpu_custom_call.1} parent=1 // pred_region
      %s13 = ssub.s32 128, 128
      %14 = vsyncadd [#allocation3], %s13
      %s16 = sshll.u32 [#allocation2], 4
      %s17 = int_to_ptr.vmem [resolvable:$true] %s16
      %19 = dma.hbm_to_vmem [thread:$0]  %s0, 128, %s17, [#allocation3]
    $region5: #{tpu_custom_call.1} parent=1 // pred_fallthru
      _
    // Predicated region
    $region6: #{tpu_custom_call.1} parent=1 // pred_check
      _
    $region7: #{tpu_custom_call.1} parent=1 // pred_check_branch
      %21 = sbr.rel (0) target = $region9
    $region8: #{tpu_custom_call.1} parent=1 // pred_region
      %s23 = ssub.s32 4352, 4352
      %24 = vsyncadd [#allocation6], %s23
      %s25 = sshll.u32 [#allocation5], 4
      %s26 = int_to_ptr.vmem [resolvable:$true] %s25
      %31 = dma.hbm_to_vmem [thread:$0]  %s1, 4352, %s26, [#allocation6], 256, 256, 16
    $region9: #{tpu_custom_call.1} parent=1 // pred_fallthru
      _
    // Predicated region
    $region10: #{tpu_custom_call.1} parent=1 // pred_check
      _
    $region11: #{tpu_custom_call.1} parent=1 // pred_check_branch
      %33 = sbr.rel (0) target = $region13
    $region12: #{tpu_custom_call.1} parent=1 // pred_region
      %34 = dma.done [#allocation3], 128
    $region13: #{tpu_custom_call.1} parent=1 // pred_fallthru
      _
    // Predicated region
    $region14: #{tpu_custom_call.1} parent=1 // pred_check
      _
    $region15: #{tpu_custom_call.1} parent=1 // pred_check_branch
      %36 = sbr.rel (0) target = $region17
    $region16: #{tpu_custom_call.1} parent=1 // pred_region
      %37 = dma.done [#allocation6], 4352
    $region17: #{tpu_custom_call.1} parent=1 // pred_fallthru
      _
    %v39 = vld [vmem:[#allocation2] sm:$0xff]
    %v40 = vpack.c.bf16 %v39, %v39
    %v41 = vld [vmem:[#allocation5] sm:$0xf]
    %v42 = vld [vmem:[#allocation5 + $0x10] sm:$0xf]
    %v43 = vld [vmem:[#allocation5 + $0x100] sm:$0x1]
    %v44 = vunpack.c.l.bf16 %v43
    %v45 = vlaneseq
    %v46 = vshrl.u32 %v45, 7
    %v47 = vsub.s32 0, %v46
    %v48 = vrot.slane %v44, %v47
    %v51 = vunpack.c.l.b16 %v41
    %v52 = vunpack.c.l.b16 %v42
    %v53 = vpack.c.b16 %v52, %v51
    %vm55 = vcmask 130048
    %v57 = vsel %vm55, %v40, 0
    %59 = vmatprep.subr.bf16.mxu0 0
    %60 = vmatpush1.bf16.msra.mxu0 %v53
    %61 = vmatprep.subr.bf16.mxu0 0
    %62 = vmatpush1.bf16.msra.mxu0 0
    %63 = vmatprep.subr.bf16.mxu0 0
    %64 = vmatpush1.bf16.msra.mxu0 0
    %65 = vmatprep.subr.bf16.mxu0 0
    %66 = vmatpush1.bf16.msra.mxu0 0
    %67 = vmatprep.subr.bf16.mxu0 0
    %68 = vmatpush1.bf16.msra.mxu0 0
    %69 = vmatprep.subr.bf16.mxu0 0
    %70 = vmatpush1.bf16.msra.mxu0 0
    %71 = vmatprep.subr.bf16.mxu0 0
    %72 = vmatpush1.bf16.msra.mxu0 0
    %73 = vmatprep.subr.bf16.mxu0 0
    %74 = vmatpush1.bf16.msra.mxu0 0
    %75 = vmatprep.subr.bf16.mxu0 0
    %76 = vmatpush1.bf16.msra.mxu0 0
    %77 = vmatprep.subr.bf16.mxu0 0
    %78 = vmatpush1.bf16.msra.mxu0 0
    %79 = vmatprep.subr.bf16.mxu0 0
    %80 = vmatpush1.bf16.msra.mxu0 0
    %81 = vmatprep.subr.bf16.mxu0 0
    %82 = vmatpush1.bf16.msra.mxu0 0
    %83 = vmatprep.subr.bf16.mxu0 0
    %84 = vmatpush1.bf16.msra.mxu0 0
    %85 = vmatprep.subr.bf16.mxu0 0
    %86 = vmatpush1.bf16.msra.mxu0 0
    %87 = vmatprep.subr.bf16.mxu0 0
    %88 = vmatpush1.bf16.msra.mxu0 0
    %89 = vmatprep.subr.bf16.mxu0 0
    %90 = vmatpush1.bf16.msra.mxu0 0
    %91 = vmatprep.mubr.bf16.mxu0 0
    %92 = vmatmul.mubr.bf16.gmra.mrb[0].mxu0 %v57
    %v93 = vpop.f32.mrb[0].mxu0
    %v94 = vadd.f32 %v48, %v93
    %v95 = vpop.f32.mrb[0].mxu0
    %v96 = vpop.f32.mrb[0].mxu0
    %v97 = vpop.f32.mrb[0].mxu0
    %98 = vdwg.mxu0
    %v99 = vmul.f32 %v94, 0.01
    %v100 = vmax.f32 %v94, %v99
    %v101 = vld [vmem:[#allocation5 + $0x4] sm:$0xf]
    %v102 = vld [vmem:[#allocation5 + $0x14] sm:$0xf]
    %v103 = vld [vmem:[#allocation5 + $0x24] sm:$0xf]
    %v104 = vld [vmem:[#allocation5 + $0x34] sm:$0xf]
    %v105 = vld [vmem:[#allocation5 + $0x44] sm:$0xf]
    %v106 = vld [vmem:[#allocation5 + $0x54] sm:$0xf]
    %v107 = vld [vmem:[#allocation5 + $0x64] sm:$0xf]
    %v108 = vld [vmem:[#allocation5 + $0x74] sm:$0xf]
    %v109 = vld [vmem:[#allocation5 + $0x84] sm:$0xf]
    %v110 = vld [vmem:[#allocation5 + $0x94] sm:$0xf]
    %v111 = vld [vmem:[#allocation5 + $0xa4] sm:$0xf]
    %v112 = vld [vmem:[#allocation5 + $0xb4] sm:$0xf]
    %v113 = vld [vmem:[#allocation5 + $0xc4] sm:$0xf]
    %v114 = vld [vmem:[#allocation5 + $0xd4] sm:$0xf]
    %v115 = vld [vmem:[#allocation5 + $0xe4] sm:$0xf]
    %v116 = vld [vmem:[#allocation5 + $0xf4] sm:$0xf]
    %v117 = vld [vmem:[#allocation5 + $0x104] sm:$0x1]
    %v118 = vunpack.c.l.bf16 %v117
    %v119 = vpack.c.bf16 %v100, %v100
    %v120 = vlaneseq
    %v121 = vshrl.u32 %v120, 7
    %v122 = vsub.s32 0, %v121
    %v123 = vrot.slane %v118, %v122
    %v140 = vunpack.c.l.b16 %v101
    %v141 = vunpack.c.l.b16 %v102
    %v142 = vunpack.c.l.b16 %v103
    %v143 = vunpack.c.l.b16 %v104
    %v144 = vunpack.c.l.b16 %v105
    %v145 = vunpack.c.l.b16 %v106
    %v146 = vunpack.c.l.b16 %v107
    %v147 = vunpack.c.l.b16 %v108
    %v148 = vunpack.c.l.b16 %v109
    %v149 = vunpack.c.l.b16 %v110
    %v150 = vunpack.c.l.b16 %v111
    %v151 = vunpack.c.l.b16 %v112
    %v152 = vunpack.c.l.b16 %v113
    %v153 = vunpack.c.l.b16 %v114
    %v154 = vunpack.c.l.b16 %v115
    %v155 = vunpack.c.l.b16 %v116
    %v156 = vpack.c.b16 %v141, %v140
    %v157 = vpack.c.b16 %v143, %v142
    %v158 = vpack.c.b16 %v145, %v144
    %v159 = vpack.c.b16 %v147, %v146
    %v160 = vpack.c.b16 %v149, %v148
    %v161 = vpack.c.b16 %v151, %v150
    %v162 = vpack.c.b16 %v153, %v152
    %v163 = vpack.c.b16 %v155, %v154
    %172 = vmatprep.subr.bf16.mxu0 0
    %173 = vmatpush1.bf16.msra.mxu0 %v156
    %174 = vmatprep.subr.bf16.mxu0 0
    %175 = vmatpush1.bf16.msra.mxu0 %v157
    %176 = vmatprep.subr.bf16.mxu0 0
    %177 = vmatpush1.bf16.msra.mxu0 %v158
    %178 = vmatprep.subr.bf16.mxu0 0
    %179 = vmatpush1.bf16.msra.mxu0 %v159
    %180 = vmatprep.subr.bf16.mxu0 0
    %181 = vmatpush1.bf16.msra.mxu0 %v160
    %182 = vmatprep.subr.bf16.mxu0 0
    %183 = vmatpush1.bf16.msra.mxu0 %v161
    %184 = vmatprep.subr.bf16.mxu0 0
    %185 = vmatpush1.bf16.msra.mxu0 %v162
    %186 = vmatprep.subr.bf16.mxu0 0
    %187 = vmatpush1.bf16.msra.mxu0 %v163
    %188 = vmatprep.subr.bf16.mxu0 0
    %189 = vmatpush1.bf16.msra.mxu0 0
    %190 = vmatprep.subr.bf16.mxu0 0
    %191 = vmatpush1.bf16.msra.mxu0 0
    %192 = vmatprep.subr.bf16.mxu0 0
    %193 = vmatpush1.bf16.msra.mxu0 0
    %194 = vmatprep.subr.bf16.mxu0 0
    %195 = vmatpush1.bf16.msra.mxu0 0
    %196 = vmatprep.subr.bf16.mxu0 0
    %197 = vmatpush1.bf16.msra.mxu0 0
    %198 = vmatprep.subr.bf16.mxu0 0
    %199 = vmatpush1.bf16.msra.mxu0 0
    %200 = vmatprep.subr.bf16.mxu0 0
    %201 = vmatpush1.bf16.msra.mxu0 0
    %202 = vmatprep.subr.bf16.mxu0 0
    %203 = vmatpush1.bf16.msra.mxu0 0
    %204 = vmatprep.mubr.bf16.mxu0 0
    %205 = vmatmul.mubr.bf16.gmra.mrb[0].mxu0 %v119
    %v206 = vpop.f32.mrb[0].mxu0
    %v207 = vadd.f32 %v123, %v206
    %v208 = vpop.f32.mrb[0].mxu0
    %v209 = vpop.f32.mrb[0].mxu0
    %v210 = vpop.f32.mrb[0].mxu0
    %211 = vdwg.mxu0
    %v212 = vmul.f32 %v207, 0.01
    %v213 = vmax.f32 %v207, %v212
    %v214 = vld [vmem:[#allocation5 + $0x8] sm:$0xff]
    %v215 = vld [vmem:[#allocation5 + $0x18] sm:$0xff]
    %v216 = vld [vmem:[#allocation5 + $0x28] sm:$0xff]
    %v217 = vld [vmem:[#allocation5 + $0x38] sm:$0xff]
    %v218 = vld [vmem:[#allocation5 + $0x48] sm:$0xff]
    %v219 = vld [vmem:[#allocation5 + $0x58] sm:$0xff]
    %v220 = vld [vmem:[#allocation5 + $0x68] sm:$0xff]
    %v221 = vld [vmem:[#allocation5 + $0x78] sm:$0xff]
    %v222 = vld [vmem:[#allocation5 + $0x88] sm:$0xff]
    %v223 = vld [vmem:[#allocation5 + $0x98] sm:$0xff]
    %v224 = vld [vmem:[#allocation5 + $0xa8] sm:$0xff]
    %v225 = vld [vmem:[#allocation5 + $0xb8] sm:$0xff]
    %v226 = vld [vmem:[#allocation5 + $0xc8] sm:$0xff]
    %v227 = vld [vmem:[#allocation5 + $0xd8] sm:$0xff]
    %v228 = vld [vmem:[#allocation5 + $0xe8] sm:$0xff]
    %v229 = vld [vmem:[#allocation5 + $0xf8] sm:$0xff]
    %v230 = vld [vmem:[#allocation5 + $0x108] sm:$0x11]
    %v231 = vunpack.c.l.bf16 %v230
    %v232 = vunpack.c.h.bf16 %v230
    %v233 = vpack.c.bf16 %v213, %v213
    %v234 = vlaneseq
    %v235 = vshrl.u32 %v234, 7
    %v236 = vsub.s32 0, %v235
    %v237 = vrot.slane %v231, %v236
    %v238 = vlaneseq
    %v239 = vshrl.u32 %v238, 7
    %v240 = vsub.s32 0, %v239
    %v241 = vrot.slane %v232, %v240
    %v258 = vunpack.c.l.b16 %v214
    %v259 = vunpack.c.h.b16 %v214
    %v260 = vunpack.c.l.b16 %v215
    %v261 = vunpack.c.h.b16 %v215
    %v262 = vunpack.c.l.b16 %v216
    %v263 = vunpack.c.h.b16 %v216
    %v264 = vunpack.c.l.b16 %v217
    %v265 = vunpack.c.h.b16 %v217
    %v266 = vunpack.c.l.b16 %v218
    %v267 = vunpack.c.h.b16 %v218
    %v268 = vunpack.c.l.b16 %v219
    %v269 = vunpack.c.h.b16 %v219
    %v270 = vunpack.c.l.b16 %v220
    %v271 = vunpack.c.h.b16 %v220
    %v272 = vunpack.c.l.b16 %v221
    %v273 = vunpack.c.h.b16 %v221
    %v274 = vunpack.c.l.b16 %v222
    %v275 = vunpack.c.h.b16 %v222
    %v276 = vunpack.c.l.b16 %v223
    %v277 = vunpack.c.h.b16 %v223
    %v278 = vunpack.c.l.b16 %v224
    %v279 = vunpack.c.h.b16 %v224
    %v280 = vunpack.c.l.b16 %v225
    %v281 = vunpack.c.h.b16 %v225
    %v282 = vunpack.c.l.b16 %v226
    %v283 = vunpack.c.h.b16 %v226
    %v284 = vunpack.c.l.b16 %v227
    %v285 = vunpack.c.h.b16 %v227
    %v286 = vunpack.c.l.b16 %v228
    %v287 = vunpack.c.h.b16 %v228
    %v288 = vunpack.c.l.b16 %v229
    %v289 = vunpack.c.h.b16 %v229
    %v290 = vpack.c.b16 %v260, %v258
    %v291 = vpack.c.b16 %v261, %v259
    %v292 = vpack.c.b16 %v264, %v262
    %v293 = vpack.c.b16 %v265, %v263
    %v294 = vpack.c.b16 %v268, %v266
    %v295 = vpack.c.b16 %v269, %v267
    %v296 = vpack.c.b16 %v272, %v270
    %v297 = vpack.c.b16 %v273, %v271
    %v298 = vpack.c.b16 %v276, %v274
    %v299 = vpack.c.b16 %v277, %v275
    %v300 = vpack.c.b16 %v280, %v278
    %v301 = vpack.c.b16 %v281, %v279
    %v302 = vpack.c.b16 %v284, %v282
    %v303 = vpack.c.b16 %v285, %v283
    %v304 = vpack.c.b16 %v288, %v286
    %v305 = vpack.c.b16 %v289, %v287
    %322 = vmatprep.subr.bf16.mxu0 %v291
    %323 = vmatpush1.bf16.msra.mxu0 %v290
    %324 = vmatprep.subr.bf16.mxu0 %v293
    %325 = vmatpush1.bf16.msra.mxu0 %v292
    %326 = vmatprep.subr.bf16.mxu0 %v295
    %327 = vmatpush1.bf16.msra.mxu0 %v294
    %328 = vmatprep.subr.bf16.mxu0 %v297
    %329 = vmatpush1.bf16.msra.mxu0 %v296
    %330 = vmatprep.subr.bf16.mxu0 %v299
    %331 = vmatpush1.bf16.msra.mxu0 %v298
    %332 = vmatprep.subr.bf16.mxu0 %v301
    %333 = vmatpush1.bf16.msra.mxu0 %v300
    %334 = vmatprep.subr.bf16.mxu0 %v303
    %335 = vmatpush1.bf16.msra.mxu0 %v302
    %336 = vmatprep.subr.bf16.mxu0 %v305
    %337 = vmatpush1.bf16.msra.mxu0 %v304
    %338 = vmatprep.subr.bf16.mxu0 0
    %339 = vmatpush1.bf16.msra.mxu0 0
    %340 = vmatprep.subr.bf16.mxu0 0
    %341 = vmatpush1.bf16.msra.mxu0 0
    %342 = vmatprep.subr.bf16.mxu0 0
    %343 = vmatpush1.bf16.msra.mxu0 0
    %344 = vmatprep.subr.bf16.mxu0 0
    %345 = vmatpush1.bf16.msra.mxu0 0
    %346 = vmatprep.subr.bf16.mxu0 0
    %347 = vmatpush1.bf16.msra.mxu0 0
    %348 = vmatprep.subr.bf16.mxu0 0
    %349 = vmatpush1.bf16.msra.mxu0 0
    %350 = vmatprep.subr.bf16.mxu0 0
    %351 = vmatpush1.bf16.msra.mxu0 0
    %352 = vmatprep.subr.bf16.mxu0 0
    %353 = vmatpush1.bf16.msra.mxu0 0
    %354 = vmatprep.mubr.bf16.mxu0 0
    %355 = vmatmul.mubr.bf16.gmra.mrb[0].mxu0 %v233
    %v356 = vpop.f32.mrb[0].mxu0
    %v357 = vadd.f32 %v237, %v356
    %v358 = vpop.f32.mrb[0].mxu0
    %v359 = vadd.f32 %v241, %v358
    %v360 = vpop.f32.mrb[0].mxu0
    %v361 = vpop.f32.mrb[0].mxu0
    %362 = vdwg.mxu0
    %363 = vst [vmem:[#allocation7] sm:$0xff] %v357
    %364 = vst [vmem:[#allocation7 + $0x8] sm:$0xff] %v359
    // Predicated region
    $region18: #{tpu_custom_call.1} parent=1 // pred_check
      _
    $region19: #{tpu_custom_call.1} parent=1 // pred_check_branch
      %366 = sbr.rel (0) target = $region21
    $region20: #{tpu_custom_call.1} parent=1 // pred_region
      %s368 = ssub.s32 256, 256
      %369 = vsyncadd [#allocation4], %s368
      %s371 = sshll.u32 [#allocation7], 4
      %s372 = int_to_ptr.vmem [resolvable:$true] %s371
      %374 = dma.vmem_to_hbm [thread:$0]  %s372, 256, %s2, [#allocation4]
    $region21: #{tpu_custom_call.1} parent=1 // pred_fallthru
      _
    // Predicated region
    $region22: #{tpu_custom_call.1} parent=1 // pred_check
      _
    $region23: #{tpu_custom_call.1} parent=1 // pred_check_branch
      %376 = sbr.rel (0) target = $region25
    $region24: #{tpu_custom_call.1} parent=1 // pred_region
      %377 = dma.done [#allocation4], 256
    $region25: #{tpu_custom_call.1} parent=1 // pred_fallthru
      _
    %378 = vsyncpa [#allocation3], 1
    %379 = vsyncpa [#allocation6], 1
    %380 = vsyncpa [#allocation4], 1

</llo_original>
